<compile_context>
chip_gen: v7x
topology: tpu7x:2x2x1
jax: 0.10.0
libtpu: 0.0.40
codegen_flags: <defaults>
</compile_context>

<pallas_src>
import jax
import jax.numpy as jnp
from jax import lax
from jax.experimental import pallas as pl
from jax.experimental.pallas import tpu as pltpu


def _round_up(x, m):
    return ((x + m - 1) // m) * m


def _cdiv(a, b):
    return -(-a // b)


def _vmem_capacity_bytes():
    """Per-TensorCore VMEM capacity (v5e/v6e: 128 MiB, v7x: 64 MiB); conservative fallback."""
    try:
        info = pltpu.get_tpu_info()
        cap = getattr(info, "vmem_capacity_bytes", None)
        if cap:
            return int(cap)
    except Exception:
        pass
    return 64 * 1024 * 1024


def gpt2_embedding(input_ids, token_table, position_table):
    """input_ids: (B, S) int; token_table: (V, E); position_table: (L, E).
    Returns (B, S, E) = token_table[input_ids] + position_table[arange(S)]."""
    B, S = input_ids.shape
    V, E = token_table.shape
    L, E2 = position_table.shape
    assert E == E2, "embed_dim mismatch between tables"
    assert S <= L, "sequence length exceeds max_length"

    out_dtype = token_table.dtype

    # ---- pad embedding width to a multiple of 128 so all stores are lane-dense ----
    E_pad = _round_up(E, 128)
    tok_pad = token_table if E_pad == E else jnp.pad(token_table, ((0, 0), (0, E_pad - E)))

    out_itemsize = int(jnp.dtype(out_dtype).itemsize)
    tab_itemsize = int(jnp.dtype(token_table.dtype).itemsize)
    pos_itemsize = int(jnp.dtype(position_table.dtype).itemsize)

    # ---- generation-aware VMEM budgeting & tile selection ----
    vmem_cap = _vmem_capacity_bytes()
    budget = int(0.55 * vmem_cap)

    def _step_bytes(bb, t):
        pos_buf = 2 * t * E_pad * pos_itemsize          # double-buffered pos tile
        out_buf = 2 * bb * t * E_pad * out_itemsize     # double-buffered out tile
        gat_buf = bb * t * E_pad * tab_itemsize         # gather scratch (single)
        return pos_buf + out_buf + gat_buf

    S8 = _round_up(S, 8)
    T = min(512, S8)                    # largest multiple-of-8 sequence tile (<= 512)
    Bb = B                              # fold the whole batch into the block if it fits
    while _step_bytes(Bb, T) > budget and Bb > 1:
        Bb = _cdiv(Bb, 2)
    while _step_bytes(Bb, T) > budget and T > 8:
        T = max(8, ((T // 2) // 8) * 8)

    num_tiles = _cdiv(S8, T)
    num_b = _cdiv(B, Bb)
    if num_tiles * num_b == 1 and B >= 2:
        # give a v7x megacore at least two independent grid points
        Bb = _cdiv(B, 2)
        num_b = _cdiv(B, Bb)

    S_pad = num_tiles * T
    B_pad = num_b * Bb

    vmem_limit = int(min(int(0.9 * vmem_cap),
                         max(2 * _step_bytes(Bb, T) + (4 << 20), 32 << 20)))

    # ---- operand prep (cheap XLA ops, done once per call) ----
    # Clamp ids like jnp.take (also guarantees every row DMA source is in bounds),
    # then pad to the grid-covered (B_pad, S_pad) extent with a valid row index (0).
    ids = jnp.clip(input_ids.astype(jnp.int32), 0, V - 1)
    ids = jnp.pad(ids, ((0, B_pad - B), (0, S_pad - S)))
    ids_flat = ids.reshape(B_pad * S_pad)

    # Positional rows actually used, padded so the (T, E_pad) block divides exactly.
    pos_pad = jnp.pad(position_table[:S], ((0, S_pad - S), (0, E_pad - E)))

    # ---- kernel (closure over the static tiling constants) ----
    def kernel(ids_ref, tok_hbm, pos_ref, out_ref, gather, sem):
        i = pl.program_id(0)            # sequence-tile index
        j = pl.program_id(1)            # batch-block index (innermost -> pos tile resident)
        seq_base = i * T
        row_base = j * Bb

        # Issue every row DMA for this tile before waiting on any of them,
        # so all Bb*T copies are in flight concurrently (hides descriptor latency).
        def issue_b(b, c):
            def issue_t(t, ct):
                flat = (row_base + b) * S_pad + seq_base + t
                tok_id = ids_ref[flat]
                pltpu.make_async_copy(tok_hbm.at[tok_id], gather.at[b, t],
                                      sem.at[0]).start()
                return ct
            return lax.fori_loop(0, T, issue_t, c)
        lax.fori_loop(0, Bb, issue_b, 0)

        # Drain: all copies share one semaphore and have identical sizes.
        def drain_b(b, c):
            def drain_t(t, ct):
                pltpu.make_async_copy(tok_hbm.at[0], gather.at[b, t],
                                      sem.at[0]).wait()
                return ct
            return lax.fori_loop(0, T, drain_t, c)
        lax.fori_loop(0, Bb, drain_b, 0)

        tok = gather[...].astype(jnp.float32)                 # (Bb, T, E_pad)
        pos = pos_ref[...].astype(jnp.float32)                # (T,  E_pad)
        out_ref[...] = (tok + pos[None, :, :]).astype(out_ref.dtype)

    grid_spec = pltpu.PrefetchScalarGridSpec(
        num_scalar_prefetch=1,                                 # ids -> SMEM
        grid=(num_tiles, num_b),
        in_specs=[
            pl.BlockSpec(memory_space=pl.ANY),                 # token table stays in HBM
            pl.BlockSpec((T, E_pad), lambda i, j, ids: (i, 0)),  # positional tile
        ],
        out_specs=pl.BlockSpec((Bb, T, E_pad), lambda i, j, ids: (j, i, 0)),
        scratch_shapes=[
            pltpu.VMEM((Bb, T, E_pad), token_table.dtype),     # gathered rows
            pltpu.SemaphoreType.DMA((1,)),                     # shared row-DMA semaphore
        ],
    )

    out = pl.pallas_call(
        kernel,
        grid_spec=grid_spec,
        out_shape=jax.ShapeDtypeStruct((B, S, E_pad), out_dtype),
        compiler_params=pltpu.CompilerParams(
            dimension_semantics=("parallel", "parallel"),
            vmem_limit_bytes=vmem_limit,
        ),
    )(ids_flat, tok_pad, pos_pad)

    return out[..., :E] if E_pad != E else out


if __name__ == "__main__":
    # Small shapes consistent with the module's forward pass.
    vocab_size = 64
    embed_dim = 128       # lane-dense last dim (multiple of 128)
    max_length = 16
    batch_size = 2
    seq_length = 8

    key = jax.random.PRNGKey(0)
    k_tok, k_pos, k_ids = jax.random.split(key, 3)

    # Deterministic parameter init matching nn.init.normal_(std=0.02).
    token_table = (0.02 * jax.random.normal(k_tok, (vocab_size, embed_dim))).astype(jnp.float32)
    position_table = (0.02 * jax.random.normal(k_pos, (max_length, embed_dim))).astype(jnp.float32)

    input_ids = jax.random.randint(k_ids, (batch_size, seq_length), 0, vocab_size,
                                   dtype=jnp.int32)

    out = gpt2_embedding(input_ids, token_table, position_table)
    out = jax.block_until_ready(out)

    # Pure-JAX reference check.
    ref = jnp.take(token_table, input_ids, axis=0) + position_table[None, :seq_length, :]
    assert out.shape == (batch_size, seq_length, embed_dim)
    assert jnp.allclose(out, ref, atol=1e-6), "mismatch vs reference"

    print("KERNEL_OK")
</pallas_src>

<mosaic_0001>
module attributes {stable_mosaic.version = 11 : i64} {
  func.func @kernel(%arg0: i32, %arg1: i32, %arg2: memref<16xi32, #tpu.memory_space<smem>>, %arg3: memref<64x128xf32, #tpu.memory_space<any>>, %arg4: memref<8x128xf32, #tpu.memory_space<vmem>>, %arg5: memref<1x8x128xf32, #tpu.memory_space<vmem>>, %arg6: memref<1x8x128xf32, #tpu.memory_space<vmem>>, %arg7: memref<1x!tpu.dma_semaphore, #tpu.memory_space<semaphore_mem>>) attributes {dimension_semantics = [#tpu.dimension_semantics<parallel>, #tpu.dimension_semantics<parallel>], iteration_bounds = array<i64: 1, 2>, scalar_prefetch = 1 : i64, scratch_operands = 2 : i64, tpu.core_type = #tpu.core_type<tc>, window_params = [{}, {transform_indices = @transform_1, window_bounds = array<i64: 8, 128>}, {transform_indices = @transform_2, window_bounds = array<i64: 1, 8, 128>}]} {
    %c8_i32 = arith.constant 8 : i32
    %0 = arith.muli %arg0, %c8_i32 : i32
    %c1_i32 = arith.constant 1 : i32
    %1 = arith.muli %arg1, %c1_i32 : i32
    %c0_i32 = arith.constant 0 : i32
    %c0_i32_0 = arith.constant 0 : i32
    %c8_i32_1 = arith.constant 8 : i32
    %2 = arith.addi %c0_i32_0, %c8_i32_1 : i32
    %c1_i32_2 = arith.constant 1 : i32
    scf.for %arg8 = %c0_i32_0 to %2 step %c1_i32_2  : i32 {
      %9 = arith.addi %1, %c0_i32 : i32
      %c8_i32_18 = arith.constant 8 : i32
      %10 = arith.muli %9, %c8_i32_18 : i32
      %11 = arith.addi %10, %0 : i32
      %12 = arith.addi %11, %arg8 : i32
      %13 = arith.index_cast %12 : i32 to index
      %14 = memref.load %arg2[%13] : memref<16xi32, #tpu.memory_space<smem>>
      %c0_i32_19 = arith.constant 0 : i32
      %c0_i32_20 = arith.constant 0 : i32
      %15 = tpu.memref_slice %arg3[%14, %c0_i32_20] : memref<64x128xf32, #tpu.memory_space<any>> -> memref<1x128xf32, #tpu.memory_space<any>>
      %16 = tpu.memref_squeeze %15 : memref<1x128xf32, #tpu.memory_space<any>> -> memref<128xf32, #tpu.memory_space<any>>
      %c0_i32_21 = arith.constant 0 : i32
      %17 = tpu.memref_slice %arg6[%c0_i32, %arg8, %c0_i32_21] : memref<1x8x128xf32, #tpu.memory_space<vmem>> -> memref<1x1x128xf32, #tpu.memory_space<vmem>>
      %18 = tpu.memref_squeeze %17 : memref<1x1x128xf32, #tpu.memory_space<vmem>> -> memref<128xf32, #tpu.memory_space<vmem>>
      %19 = tpu.memref_slice %arg7[%c0_i32_19] : memref<1x!tpu.dma_semaphore, #tpu.memory_space<semaphore_mem>> -> memref<1x!tpu.dma_semaphore, #tpu.memory_space<semaphore_mem>>
      %20 = tpu.memref_squeeze %19 : memref<1x!tpu.dma_semaphore, #tpu.memory_space<semaphore_mem>> -> memref<!tpu.dma_semaphore, #tpu.memory_space<semaphore_mem>>
      tpu.enqueue_dma source(%16 : memref<128xf32, #tpu.memory_space<any>>) target(%18 : memref<128xf32, #tpu.memory_space<vmem>>) target_semaphore(%20 : memref<!tpu.dma_semaphore, #tpu.memory_space<semaphore_mem>>)
    }
    %c8_i32_3 = arith.constant 8 : i32
    %c1_i32_4 = arith.constant 1 : i32
    %c0_i32_5 = arith.constant 0 : i32
    %c0_i32_6 = arith.constant 0 : i32
    %c8_i32_7 = arith.constant 8 : i32
    %3 = arith.addi %c0_i32_6, %c8_i32_7 : i32
    %c1_i32_8 = arith.constant 1 : i32
    scf.for %arg8 = %c0_i32_6 to %3 step %c1_i32_8  : i32 {
      %c0_i32_18 = arith.constant 0 : i32
      %c0_i32_19 = arith.constant 0 : i32
      %c0_i32_20 = arith.constant 0 : i32
      %9 = tpu.memref_slice %arg3[%c0_i32_18, %c0_i32_20] : memref<64x128xf32, #tpu.memory_space<any>> -> memref<1x128xf32, #tpu.memory_space<any>>
      %10 = tpu.memref_squeeze %9 : memref<1x128xf32, #tpu.memory_space<any>> -> memref<128xf32, #tpu.memory_space<any>>
      %c0_i32_21 = arith.constant 0 : i32
      %11 = tpu.memref_slice %arg6[%c0_i32_5, %arg8, %c0_i32_21] : memref<1x8x128xf32, #tpu.memory_space<vmem>> -> memref<1x1x128xf32, #tpu.memory_space<vmem>>
      %12 = tpu.memref_squeeze %11 : memref<1x1x128xf32, #tpu.memory_space<vmem>> -> memref<128xf32, #tpu.memory_space<vmem>>
      %13 = tpu.memref_slice %arg7[%c0_i32_19] : memref<1x!tpu.dma_semaphore, #tpu.memory_space<semaphore_mem>> -> memref<1x!tpu.dma_semaphore, #tpu.memory_space<semaphore_mem>>
      %14 = tpu.memref_squeeze %13 : memref<1x!tpu.dma_semaphore, #tpu.memory_space<semaphore_mem>> -> memref<!tpu.dma_semaphore, #tpu.memory_space<semaphore_mem>>
      tpu.wait_dma2 semaphore(%14 : memref<!tpu.dma_semaphore, #tpu.memory_space<semaphore_mem>>) src(%10 : memref<128xf32, #tpu.memory_space<any>>) dst(%12 : memref<128xf32, #tpu.memory_space<vmem>>)
    }
    %c8_i32_9 = arith.constant 8 : i32
    %c1_i32_10 = arith.constant 1 : i32
    %c0 = arith.constant 0 : index
    %c0_11 = arith.constant 0 : index
    %c0_12 = arith.constant 0 : index
    %4 = vector.load %arg6[%c0, %c0_11, %c0_12] : memref<1x8x128xf32, #tpu.memory_space<vmem>>, vector<1x8x128xf32>
    %c0_13 = arith.constant 0 : index
    %c0_14 = arith.constant 0 : index
    %5 = vector.load %arg4[%c0_13, %c0_14] : memref<8x128xf32, #tpu.memory_space<vmem>>, vector<8x128xf32>
    %6 = vector.shape_cast %5 : vector<8x128xf32> to vector<1x8x128xf32>
    %7 = arith.addf %4, %6 : vector<1x8x128xf32>
    %c0_15 = arith.constant 0 : index
    %c0_16 = arith.constant 0 : index
    %c0_17 = arith.constant 0 : index
    %8 = vector.load %arg5[%c0_15, %c0_16, %c0_17] : memref<1x8x128xf32, #tpu.memory_space<vmem>>, vector<1x8x128xf32>
    tpu.vector_store %arg5[%c0_15, %c0_16, %c0_17], %7 {strides = array<i32>} : memref<1x8x128xf32, #tpu.memory_space<vmem>>, vector<1x8x128xf32>,
    return
  }
  func.func @transform_1(%arg0: i32, %arg1: i32, %arg2: memref<16xi32, #tpu.memory_space<smem>>) -> (i32, i32) {
    %c0_i32 = arith.constant 0 : i32
    %c0_i32_0 = arith.constant 0 : i32
    return %arg0, %c0_i32 : i32, i32
  }
  func.func @transform_2(%arg0: i32, %arg1: i32, %arg2: memref<16xi32, #tpu.memory_space<smem>>) -> (i32, i32, i32) {
    %c0_i32 = arith.constant 0 : i32
    %c0_i32_0 = arith.constant 0 : i32
    return %arg1, %arg0, %c0_i32 : i32, i32, i32
  }
}

</mosaic_0001>

<llo_original>
// kernel: tpu_custom_call.1
$region0: #{tpu_custom_call.1}
  #allocation0 [shape = 'u32[]', space=smem, size = 0x4, offset = 0x4, fixed_abs, tag = 'smem constant byte address 0x4 - core index']
  #allocation1 [shape = 'u32[144,128]{1,0:T(1,128)}', space=vmem, size = 0x12000, scoped, tag = 'internal scratch']
  #allocation2 [shape = 'f32[1,8,128]{2,1,0:T(8,128)}', space=vmem, size = 0x1000, scoped, tag = 'scratch operand']
  #allocation3 [shape = 's32[1]{0}', space=sflag, size = 0x4, scoped, tag = 'scratch operand']
  #allocation4 [shape = 's32[1]{0}', space=sflag, size = 0x4, scoped, tag = 'scoped memory for tpu_custom_call.1']
  #allocation5 [shape = 'u8[512]{0}', space=smem, size = 0x200, scoped, tag = 'prefetched SMEM operand 0']
  #allocation10 [shape = 's32[]', space=sflag, size = 0x4, offset = 0, fixed_abs, tag = 'sflag constant byte address 0x0 - dummy sync flag']
  #allocation11 [shape = 's32[]', space=sflag, size = 0x4, offset = 0, fixed_abs, tag = 'sflag constant byte address 0x0 - dummy sync flag']
  #allocation12 [shape = 'u32[]', space=smem, size = 0x4, offset = 0x44, fixed_abs, tag = 'smem constant byte address 0x44 - assertion arg 0']
  #allocation13 [shape = 'u32[]', space=smem, size = 0x4, offset = 0x48, fixed_abs, tag = 'smem constant byte address 0x48 - assertion arg 1']
  %s0 = inlined_call_operand.hbm [shape: s32[16], index: 0, kind: input, shape index: {}]
  %s1 = inlined_call_operand.hbm [shape: f32[64,128], index: 1, kind: input, shape index: {}]
  %s2 = inlined_call_operand.hbm [shape: f32[8,128], index: 2, kind: input, shape index: {}]
  %s3 = inlined_call_operand.hbm [shape: f32[2,8,128], index: 3, kind: output, shape index: {}]
  %s4 = sld [smem:[#allocation0]]
  $region59: #{tpu_custom_call.1} parent=0
    _
  %s6 = ssub.s32 1, %s4
  %s7 = scalar_select 0, %s6, %s4
  %9 = dma.hbm_to_smem %s0, 16, [#allocation5], [#allocation4]
  %10 = dma.done [#allocation4], 16
  %11 = sfence
  $region1: #{tpu_custom_call.1} parent=0
    #allocation6 [shape = 'u8[4096]{0}', space=vmem, size = 0x1000, scoped, tag = 'input window, operand 2, single buffered']
    #allocation7 [shape = 's32[2]{0}', space=sflag, size = 0x8, scoped, tag = 'scoped memory for tpu_custom_call.1']
    #allocation8 [shape = 's32[2]{0}', space=sflag, size = 0x8, scoped, tag = 'scoped memory for tpu_custom_call.1']
    #allocation9 [shape = 'u8[8192]{0}', space=vmem, size = 0x2000, scoped, tag = 'output window, operand 0']
    %12 = vsyncpa [#allocation7], 0
    %13 = vsyncpa [#allocation8], 0
    %s14 = scalar_lea.sflag [#allocation8], 1
    %15 = vsyncpa %s14, 0
    loop: start=0, step=1, limit=4
    $region2: #{tpu_custom_call.1} parent=1 // loop_pre_header
      _
    $region3: #{tpu_custom_call.1} parent=1 // loop_header
      %s17 = sphi 0, %s21
      %p18 = scmp.ge.s32.totalorder %s17, 4
      %s24 = sphi 0, %s36
      %s25 = sphi 0, %s32
      %s26 = sphi 0, %s24
      %s27 = sphi 0, %s25
      %s28 = sphi 0, %s26
      %s29 = sphi 0, %s27
      %s39 = sphi 0, %s41
      %s42 = sphi 0, %s39
      %s43 = sphi 0, %s42
      %s59 = sphi 0, %s43
      %s67 = sphi 0, %s69
      %s70 = sphi 0, %s67
      %s71 = sphi 0, %s70
      %s87 = sphi 0, %s71
    $region4: #{tpu_custom_call.1} parent=1 // loop_header_branch
      %20 = sbr.rel (%p18) target = $region8
    $region5: #{tpu_custom_call.1} parent=1 // loop_body
      %s22 = ssub.s32 %s17, 1
      %s23 = ssub.s32 %s17, 2
      %s30 = sadd.s32 1, %s25
      %p31 = scmp.ge.s32.totalorder %s30, 2
      %s32 = scalar_select %p31, 0, %s30
      %s33 = sadd.s32 1, %s24
      %s34 = scalar_select %p31, %s33, %s24
      %p35 = scmp.ge.s32.totalorder %s34, 1
      %s36 = scalar_select %p35, 0, %s34
      %s37 = ssub.s32 %s24, %s36
      %p38 = scmp.eq.s32.totalorder %s37, 0
      %s40 = sadd.s32 %s39, 1
      %s41 = scalar_select %p38, %s39, %s40
      %p44 = pneg %p38
      %p45 = scmp.eq.s32.totalorder %s17, 1
      %p46 = por %p44, %p45
      %p47 = scmp.ne.s32.totalorder %s39, %s42
      %p48 = scmp.eq.s32.totalorder %s17, 0
      %p49 = por %p47, %p48
      %p50 = scmp.ne.s32.totalorder %s39, %s42
      %p51 = scmp.eq.s32.totalorder %s22, 1
      %p52 = por %p50, %p51
      %p53 = scmp.ne.s32.totalorder %s42, %s43
      %p54 = scmp.eq.s32.totalorder %s22, 0
      %p55 = por %p53, %p54
      %p56 = scmp.ne.s32.totalorder %s42, %s43
      %p57 = scmp.eq.s32.totalorder %s23, 1
      %p58 = por %p56, %p57
      %p60 = scmp.ne.s32.totalorder %s43, %s59
      %p61 = scmp.eq.s32.totalorder %s23, 0
      %p62 = por %p60, %p61
      %s63 = ssub.s32 %s25, %s32
      %s64 = ssub.s32 %s24, %s36
      %s65 = sor.u32 %s63, %s64
      %p66 = scmp.eq.s32.totalorder %s65, 0
      %s68 = sadd.s32 %s67, 1
      %s69 = scalar_select %p66, %s67, %s68
      %p72 = pneg %p66
      %p73 = scmp.eq.s32.totalorder %s17, 1
      %p74 = por %p72, %p73
      %p75 = scmp.ne.s32.totalorder %s67, %s70
      %p76 = scmp.eq.s32.totalorder %s17, 0
      %p77 = por %p75, %p76
      %p78 = scmp.ne.s32.totalorder %s67, %s70
      %p79 = scmp.eq.s32.totalorder %s22, 1
      %p80 = por %p78, %p79
      %p81 = scmp.ne.s32.totalorder %s70, %s71
      %p82 = scmp.eq.s32.totalorder %s22, 0
      %p83 = por %p81, %p82
      %p84 = scmp.ne.s32.totalorder %s70, %s71
      %p85 = scmp.eq.s32.totalorder %s23, 1
      %p86 = por %p84, %p85
      %p88 = scmp.ne.s32.totalorder %s71, %s87
      %p89 = scmp.eq.s32.totalorder %s23, 0
      %p90 = por %p88, %p89
      %p91 = scmp.le.s32.totalorder 1, %s17
      %p92 = scmp.lt.s32.totalorder %s17, 3
      %p93 = pnand %p91, %p92
      %p94 = pneg %p93
      // Predicated region
      $region9: #{tpu_custom_call.1} parent=5 // pred_check
        _
      $region10: #{tpu_custom_call.1} parent=5 // pred_check_branch
        %96 = sbr.rel (%p93) target = $region12
      $region11: #{tpu_custom_call.1} parent=5 // pred_region
        %s97 = ssub.s32 %s17, 1
        // Predicated region
        $region13: #{tpu_custom_call.1} parent=11 // pred_check
          %p98 = pneg %p55
        $region14: #{tpu_custom_call.1} parent=11 // pred_check_branch
          %100 = sbr.rel (%p98) target = $region16
        $region15: #{tpu_custom_call.1} parent=11 // pred_region
          %s102 = ssub.s32 128, 128
          %103 = vsyncadd [#allocation7], %s102
          %s104 = smul.addr %s26, 128
          %s105 = scalar_lea.hbm %s2, %s104
          %s107 = sshll.u32 [#allocation6], 4
          %s108 = int_to_ptr.vmem [resolvable:$true] %s107
          %110 = dma.hbm_to_vmem [thread:$0]  %s105, 128, %s108, [#allocation7]
        $region16: #{tpu_custom_call.1} parent=11 // pred_fallthru
          _
      $region12: #{tpu_custom_call.1} parent=5 // pred_fallthru
        _
      %p111 = scmp.lt.s32.totalorder %s17, 2
      // Predicated region
      $region17: #{tpu_custom_call.1} parent=5 // pred_check
        %p112 = pneg %p111
      $region18: #{tpu_custom_call.1} parent=5 // pred_check_branch
        %114 = sbr.rel (%p112) target = $region20
      $region19: #{tpu_custom_call.1} parent=5 // pred_region
        _
      $region20: #{tpu_custom_call.1} parent=5 // pred_fallthru
        _
      %p115 = scmp.le.s32.totalorder 1, %s17
      %p116 = scmp.lt.s32.totalorder %s17, 3
      %p117 = pnand %p115, %p116
      %p118 = pneg %p117
      // Predicated region
      $region21: #{tpu_custom_call.1} parent=5 // pred_check
        _
      $region22: #{tpu_custom_call.1} parent=5 // pred_check_branch
        %120 = sbr.rel (%p117) target = $region24
      $region23: #{tpu_custom_call.1} parent=5 // pred_region
        %s121 = ssub.s32 %s17, 1
        // Predicated region
        $region25: #{tpu_custom_call.1} parent=23 // pred_check
          %p122 = pneg %p55
        $region26: #{tpu_custom_call.1} parent=23 // pred_check_branch
          %124 = sbr.rel (%p122) target = $region28
        $region27: #{tpu_custom_call.1} parent=23 // pred_region
          %125 = dma.done [#allocation7], 128
        $region28: #{tpu_custom_call.1} parent=23 // pred_fallthru
          _
        %p126 = pneg %p55
        %p127 = pneg %p52
        %p128 = pneg %p83
        %p129 = pneg %p80
        %s130 = sand.u32 %s70, 1
        %s131 = scalar_lea.sflag [#allocation8], %s130
        %s132 = sand.u32 %s70, 1
        %s133 = smul.addr %s132, 8
        %s134 = scalar_lea.vmem [#allocation9], %s133
        %s135 = smul.u32 %s26, 8
        loop: start=0, step=1, limit=8
        $region29: #{tpu_custom_call.1} parent=23 // loop_pre_header
          _
        $region30: #{tpu_custom_call.1} parent=23 // loop_header
          %s137 = sphi 0, %s141
          %p138 = scmp.ge.s32.totalorder %s137, 8
        $region31: #{tpu_custom_call.1} parent=23 // loop_header_branch
          %140 = sbr.rel (%p138) target = $region35
        $region32: #{tpu_custom_call.1} parent=23 // loop_body
          %s142 = smul.u32 %s27, 8
          %s143 = sadd.s32 %s142, %s135
          %s144 = sadd.s32 %s143, %s137
          %s145 = sld [smem:[#allocation5 + %s144]]
          %s146 = smul.addr %s145, 16
          %s147 = scalar_lea.hbm %s1, %s146
          %s148 = scalar_lea.vmem [#allocation2], %s137
          // Predicated region
          $region36: #{tpu_custom_call.1} parent=32 // pred_check
            _
          $region37: #{tpu_custom_call.1} parent=32 // pred_check_branch
            %150 = sbr.rel target = $region39
          $region38: #{tpu_custom_call.1} parent=32 // pred_region
            %151 = sst [smem:[#allocation12]] [#allocation11]
            %152 = sst [smem:[#allocation13]] [#allocation10]
          $region39: #{tpu_custom_call.1} parent=32 // pred_fallthru
            _
          %154 = shalt.err (0)
          %s156 = sshll.u32 %s148, 4
          %s157 = int_to_ptr.vmem [resolvable:$true] %s156
          %159 = dma.hbm_to_vmem [thread:$0]  %s147, 16, %s157, [#allocation3]
        $region33: #{tpu_custom_call.1} parent=23 // loop_footer
          %s141 = sadd.s32 1, %s137
        $region34: #{tpu_custom_call.1} parent=23 // loop_footer_branch
          %136 = sbr.rel target = $region30
        $region35: #{tpu_custom_call.1} parent=23 // loop_exit
          _
        loop: start=0, step=1, limit=8
        $region40: #{tpu_custom_call.1} parent=23 // loop_pre_header
          _
        $region41: #{tpu_custom_call.1} parent=23 // loop_header
          %s161 = sphi 0, %s165
          %p162 = scmp.ge.s32.totalorder %s161, 8
        $region42: #{tpu_custom_call.1} parent=23 // loop_header_branch
          %164 = sbr.rel (%p162) target = $region46
        $region43: #{tpu_custom_call.1} parent=23 // loop_body
          %167 = dma.done [#allocation3], 16
        $region44: #{tpu_custom_call.1} parent=23 // loop_footer
          %s165 = sadd.s32 1, %s161
        $region45: #{tpu_custom_call.1} parent=23 // loop_footer_branch
          %160 = sbr.rel target = $region41
        $region46: #{tpu_custom_call.1} parent=23 // loop_exit
          _
        %v168 = vld [vmem:[#allocation2] sm:$0xff]
        %v169 = vld [vmem:[#allocation6] sm:$0xff]
        %v170 = vadd.f32 %v168, %v169
        %171 = vst [vmem:[%s134] sm:$0xff] %v170
        %s172 = sand.u32 %s70, 1
        %s173 = scalar_lea.sflag [#allocation8], %s172
        %s174 = sand.u32 %s70, 1
        %s175 = smul.addr %s174, 8
        %s176 = scalar_lea.vmem [#allocation9], %s175
        // Predicated region
        $region47: #{tpu_custom_call.1} parent=23 // pred_check
          %p177 = pneg %p80
        $region48: #{tpu_custom_call.1} parent=23 // pred_check_branch
          %179 = sbr.rel (%p177) target = $region50
        $region49: #{tpu_custom_call.1} parent=23 // pred_region
          %s181 = ssub.s32 128, 128
          %182 = vsyncadd %s173, %s181
          %s183 = sadd.s32 %s26, %s27
          %s184 = smul.addr %s183, 128
          %s185 = scalar_lea.hbm %s3, %s184
          %s187 = sshll.u32 %s176, 4
          %s188 = int_to_ptr.vmem [resolvable:$true] %s187
          %190 = dma.vmem_to_hbm [thread:$0]  %s188, 128, %s185, %s173
        $region50: #{tpu_custom_call.1} parent=23 // pred_fallthru
          _
      $region24: #{tpu_custom_call.1} parent=5 // pred_fallthru
        _
      %p191 = scmp.le.s32.totalorder 2, %s17
      // Predicated region
      $region51: #{tpu_custom_call.1} parent=5 // pred_check
        %p192 = pneg %p191
      $region52: #{tpu_custom_call.1} parent=5 // pred_check_branch
        %194 = sbr.rel (%p192) target = $region54
      $region53: #{tpu_custom_call.1} parent=5 // pred_region
        %s195 = ssub.s32 %s17, 2
        // Predicated region
        $region55: #{tpu_custom_call.1} parent=53 // pred_check
          %p196 = pneg %p86
        $region56: #{tpu_custom_call.1} parent=53 // pred_check_branch
          %198 = sbr.rel (%p196) target = $region58
        $region57: #{tpu_custom_call.1} parent=53 // pred_region
          %s199 = sand.u32 %s71, 1
          %s200 = scalar_lea.sflag [#allocation8], %s199
          %s201 = sand.u32 %s71, 1
          %s202 = smul.addr %s201, 8
          %s203 = scalar_lea.vmem [#allocation9], %s202
          %204 = dma.done %s200, 128
        $region58: #{tpu_custom_call.1} parent=53 // pred_fallthru
          _
      $region54: #{tpu_custom_call.1} parent=5 // pred_fallthru
        _
    $region6: #{tpu_custom_call.1} parent=1 // loop_footer
      %s21 = sadd.s32 1, %s17
    $region7: #{tpu_custom_call.1} parent=1 // loop_footer_branch
      %16 = sbr.rel target = $region3
    $region8: #{tpu_custom_call.1} parent=1 // loop_exit
      _
    %205 = vsyncpa [#allocation7], 1
    %s206 = scalar_lea.sflag [#allocation7], 1
    %207 = vsyncpa %s206, 1
    %208 = vsyncpa [#allocation8], 1
    %s209 = scalar_lea.sflag [#allocation8], 1
    %210 = vsyncpa %s209, 1
  %211 = vsyncmov [#allocation3]
  %s212 = vpop.sfrf %211
  %p213 = scmp.eq.s32.totalorder %s212, 0
  %p214 = pneg %p213
  %216 = shalt.err (%p214)

</llo_original>
